<compile_context>
chip_gen: v5e
topology: v5e:2x2
jax: 0.10.0
libtpu: 0.0.40
codegen_flags: <defaults>
</compile_context>

<pallas_src>
import jax
import jax.numpy as jnp
from jax.experimental import pallas as pl
from jax.experimental.pallas import tpu as pltpu


def _fc_kernel(x_ref, w_ref, b_ref, o_ref):
    # x: (B, K) f32 resident; w: (K, tn) bf16 tile; b: (1, tn) f32; o: (B, tn).
    x_bf = x_ref[...].astype(jnp.bfloat16)
    acc = jnp.dot(x_bf, w_ref[...], preferred_element_type=jnp.float32)
    o_ref[...] = (acc + b_ref[...]).astype(o_ref.dtype)


def _pick_tn(n_pad):
    # Prefer 2 lane-dense tiles (one per TensorCore on v7x); otherwise one
    # full-width tile. n_pad is always a multiple of 128.
    if n_pad >= 256 and (n_pad // 2) % 128 == 0:
        return n_pad // 2
    return n_pad


def prepare_fc_params(w, b):
    """One-time weight-load-time prep.

    w: (N, K) f32 PyTorch-layout nn.Linear weight; b: (N,) f32 bias.
    Returns (w_t_pad bf16 (K, Npad), b_pad f32 (1, Npad), N).
    Transpose + pad + bf16 cast happen here exactly once, never at call time.
    """
    N, K = w.shape
    n_pad = ((N + 127) // 128) * 128
    w_t = jnp.transpose(w)                                   # (K, N)
    w_t_pad = jnp.zeros((K, n_pad), dtype=jnp.bfloat16)
    w_t_pad = w_t_pad.at[:, :N].set(w_t.astype(jnp.bfloat16))
    b_pad = jnp.zeros((1, n_pad), dtype=jnp.float32).at[0, :N].set(b)
    return jax.block_until_ready(w_t_pad), jax.block_until_ready(b_pad), N


def resnet50_tail_fc(x, w_t_pad, b_pad, num_classes):
    """x: (B, K) f32; w_t_pad: (K, Npad) bf16; b_pad: (1, Npad) f32."""
    B, K = x.shape
    K2, n_pad = w_t_pad.shape
    assert K == K2 and n_pad % 128 == 0 and B % 8 == 0

    tn = _pick_tn(n_pad)
    grid = (n_pad // tn,)

    cost = pl.CostEstimate(
        flops=2 * B * K * n_pad,
        transcendentals=0,
        bytes_accessed=(K * n_pad * w_t_pad.dtype.itemsize  # weight (dominant)
                        + B * K * 4                          # x
                        + n_pad * 4                          # bias
                        + B * n_pad * 4),                    # output
    )

    out = pl.pallas_call(
        _fc_kernel,
        out_shape=jax.ShapeDtypeStruct((B, n_pad), x.dtype),
        grid_spec=pltpu.PrefetchScalarGridSpec(
            num_scalar_prefetch=0,
            grid=grid,
            in_specs=[
                pl.BlockSpec((B, K), lambda j: (0, 0)),    # x, resident
                pl.BlockSpec((K, tn), lambda j: (0, j)),   # weight column tile
                pl.BlockSpec((1, tn), lambda j: (0, j)),   # bias tile
            ],
            out_specs=pl.BlockSpec((B, tn), lambda j: (0, j)),
        ),
        compiler_params=pltpu.CompilerParams(
            dimension_semantics=("parallel",),
        ),
        cost_estimate=cost,
    )(x, w_t_pad, b_pad)

    return out[:, :num_classes]


if __name__ == "__main__":
    # Small shapes consistent with the module: in_features fixed at 2048.
    # num_classes=250 (non-multiple of 128) exercises the padding/slicing path.
    B, K, N = 8, 2048, 250
    key = jax.random.PRNGKey(0)
    kx, kw, kb = jax.random.split(key, 3)

    x = jax.random.normal(kx, (B, K), dtype=jnp.float32)
    # PyTorch stores nn.Linear weight as (N, K).
    w = jax.random.normal(kw, (N, K), dtype=jnp.float32) * 0.02
    b = jax.random.normal(kb, (N,), dtype=jnp.float32) * 0.01

    # One-time param prep (transpose / pad / bf16) -- not per call.
    w_t_pad, b_pad, n_classes = prepare_fc_params(w, b)

    out = resnet50_tail_fc(x, w_t_pad, b_pad, n_classes)
    out = jax.block_until_ready(out)
    assert out.shape == (B, N)

    # Reference matching the kernel's bf16-weight / f32-accumulate math.
    ref_bf16 = jnp.dot(
        x.astype(jnp.bfloat16), w.T.astype(jnp.bfloat16),
        preferred_element_type=jnp.float32,
    ) + b
    assert jnp.allclose(out, ref_bf16, atol=1e-3, rtol=1e-3)

    # Loose sanity check against the full-f32 nn.Linear forward.
    ref_f32 = x @ w.T + b
    assert jnp.allclose(out, ref_f32, atol=5e-2, rtol=5e-2)

    print("KERNEL_OK")
</pallas_src>

<mosaic_0001>
module attributes {stable_mosaic.version = 11 : i64} {
  func.func @_fc_kernel(%arg0: i32, %arg1: memref<8x2048xf32, #tpu.memory_space<vmem>>, %arg2: memref<2048x128xbf16, #tpu.memory_space<vmem>>, %arg3: memref<1x128xf32, #tpu.memory_space<vmem>>, %arg4: memref<8x128xf32, #tpu.memory_space<vmem>>) attributes {dimension_semantics = [#tpu.dimension_semantics<parallel>], iteration_bounds = array<i64: 2>, scalar_prefetch = 0 : i64, scratch_operands = 0 : i64, tpu.core_type = #tpu.core_type<tc>, window_params = [{pipeline_mode = #tpu.pipeline_mode<synchronous>, transform_indices = @transform_0, window_bounds = array<i64: 8, 2048>}, {transform_indices = @transform_1, window_bounds = array<i64: 2048, 128>}, {transform_indices = @transform_2, window_bounds = array<i64: 1, 128>}, {transform_indices = @transform_3, window_bounds = array<i64: 8, 128>}]} {
    %c0 = arith.constant 0 : index
    %c0_0 = arith.constant 0 : index
    %0 = vector.load %arg1[%c0, %c0_0] : memref<8x2048xf32, #tpu.memory_space<vmem>>, vector<8x2048xf32>
    %1 = arith.truncf %0 : vector<8x2048xf32> to vector<8x2048xbf16>
    %c0_1 = arith.constant 0 : index
    %c0_2 = arith.constant 0 : index
    %2 = vector.load %arg2[%c0_1, %c0_2] : memref<2048x128xbf16, #tpu.memory_space<vmem>>, vector<2048x128xbf16>
    %cst = arith.constant dense<0.000000e+00> : vector<8x128xf32>
    %3 = tpu.matmul %1, %2, %cst {dimension_numbers = #tpu.dot_dimension_numbers<[1], [0], [0], [1], [0, 0, 1, 1], [], []>} : vector<8x2048xbf16>, vector<2048x128xbf16>, vector<8x128xf32> -> vector<8x128xf32>
    %c0_3 = arith.constant 0 : index
    %c0_4 = arith.constant 0 : index
    %4 = vector.load %arg3[%c0_3, %c0_4] : memref<1x128xf32, #tpu.memory_space<vmem>>, vector<1x128xf32>
    %5 = vector.broadcast %4 : vector<1x128xf32> to vector<8x128xf32>
    %6 = arith.addf %3, %5 : vector<8x128xf32>
    %c0_5 = arith.constant 0 : index
    %c0_6 = arith.constant 0 : index
    %7 = vector.load %arg4[%c0_5, %c0_6] : memref<8x128xf32, #tpu.memory_space<vmem>>, vector<8x128xf32>
    tpu.vector_store %arg4[%c0_5, %c0_6], %6 {strides = array<i32>} : memref<8x128xf32, #tpu.memory_space<vmem>>, vector<8x128xf32>,
    return
  }
  func.func @transform_0(%arg0: i32) -> (i32, i32) {
    %c0_i32 = arith.constant 0 : i32
    %c0_i32_0 = arith.constant 0 : i32
    %c0_i32_1 = arith.constant 0 : i32
    return %c0_i32, %c0_i32_0 : i32, i32
  }
  func.func @transform_1(%arg0: i32) -> (i32, i32) {
    %c0_i32 = arith.constant 0 : i32
    %c0_i32_0 = arith.constant 0 : i32
    return %c0_i32, %arg0 : i32, i32
  }
  func.func @transform_2(%arg0: i32) -> (i32, i32) {
    %c0_i32 = arith.constant 0 : i32
    %c0_i32_0 = arith.constant 0 : i32
    return %c0_i32, %arg0 : i32, i32
  }
  func.func @transform_3(%arg0: i32) -> (i32, i32) {
    %c0_i32 = arith.constant 0 : i32
    %c0_i32_0 = arith.constant 0 : i32
    return %c0_i32, %arg0 : i32, i32
  }
}

</mosaic_0001>

<llo_original>
// kernel: tpu_custom_call.1
$region0: #{tpu_custom_call.1}
  #allocation0 [shape = 'u32[]', space=smem, size = 0x4, offset = 0x4, fixed_abs, tag = 'smem constant byte address 0x4 - core index']
  #allocation1 [shape = 'u32[72,128]{1,0:T(1,128)}', space=vmem, size = 0x9000, scoped, tag = 'internal scratch']
  %s0 = inlined_call_operand.hbm [shape: f32[8,2048], index: 0, kind: input, shape index: {}]
  %s1 = inlined_call_operand.hbm [shape: bf16[2048,256], index: 1, kind: input, shape index: {}]
  %s2 = inlined_call_operand.hbm [shape: f32[1,256], index: 2, kind: input, shape index: {}]
  %s3 = inlined_call_operand.hbm [shape: f32[8,256], index: 3, kind: output, shape index: {}]
  %s4 = sld [smem:[#allocation0]]
  $region57: #{tpu_custom_call.1} parent=0
    _
  %s6 = ssub.s32 1, %s4
  %s7 = scalar_select 0, %s6, %s4
  $region1: #{tpu_custom_call.1} parent=0
    #allocation2 [shape = 'u8[65536]{0}', space=vmem, size = 0x10000, scoped, tag = 'input window, operand 0, single buffered']
    #allocation3 [shape = 's32[2]{0}', space=sflag, size = 0x8, scoped, tag = 'scoped memory for tpu_custom_call.1']
    #allocation4 [shape = 's32[2]{0}', space=sflag, size = 0x8, scoped, tag = 'scoped memory for tpu_custom_call.1']
    #allocation5 [shape = 'u8[1048576]{0}', space=vmem, size = 0x100000, scoped, tag = 'input window, operand 1']
    #allocation6 [shape = 's32[2]{0}', space=sflag, size = 0x8, scoped, tag = 'scoped memory for tpu_custom_call.1']
    #allocation7 [shape = 'u8[1024]{0}', space=vmem, size = 0x400, scoped, tag = 'input window, operand 2']
    #allocation8 [shape = 'u8[8192]{0}', space=vmem, size = 0x2000, scoped, tag = 'output window, operand 0']
    %8 = vsyncpa [#allocation3], 0
    %9 = vsyncpa [#allocation6], 0
    %s10 = scalar_lea.sflag [#allocation6], 1
    %11 = vsyncpa %s10, 0
    %12 = vsyncpa [#allocation4], 0
    %s13 = scalar_lea.sflag [#allocation4], 1
    %14 = vsyncpa %s13, 0
    loop: start=0, step=1, limit=4
    $region2: #{tpu_custom_call.1} parent=1 // loop_pre_header
      _
    $region3: #{tpu_custom_call.1} parent=1 // loop_header
      %s16 = sphi 0, %s20
      %p17 = scmp.ge.s32.totalorder %s16, 4
      %s24 = sphi 0, %s24
      %s26 = sphi 0, %s24
      %s27 = sphi 0, %s26
      %s41 = sphi 0, %s27
      %s47 = sphi 0, %s49
      %s50 = sphi 0, %s47
      %s51 = sphi 0, %s50
      %s67 = sphi 0, %s51
      %s73 = sphi 0, %s75
      %s76 = sphi 0, %s73
      %s77 = sphi 0, %s76
      %s93 = sphi 0, %s77
      %s99 = sphi 0, %s101
      %s102 = sphi 0, %s99
      %s103 = sphi 0, %s102
      %s119 = sphi 0, %s103
    $region4: #{tpu_custom_call.1} parent=1 // loop_header_branch
      %19 = sbr.rel (%p17) target = $region8
    $region5: #{tpu_custom_call.1} parent=1 // loop_body
      %s21 = ssub.s32 %s16, 1
      %s22 = ssub.s32 %s16, 2
      %s23 = sadd.s32 %s16, 1
      %s25 = sadd.s32 %s24, 1
      %p28 = scmp.eq.s32.totalorder %s16, 1
      %p29 = scmp.ne.s32.totalorder %s24, %s26
      %p30 = scmp.eq.s32.totalorder %s16, 0
      %p31 = por %p29, %p30
      %p32 = scmp.ne.s32.totalorder %s24, %s26
      %p33 = scmp.eq.s32.totalorder %s21, 1
      %p34 = por %p32, %p33
      %p35 = scmp.ne.s32.totalorder %s26, %s27
      %p36 = scmp.eq.s32.totalorder %s21, 0
      %p37 = por %p35, %p36
      %p38 = scmp.ne.s32.totalorder %s26, %s27
      %p39 = scmp.eq.s32.totalorder %s22, 1
      %p40 = por %p38, %p39
      %p42 = scmp.ne.s32.totalorder %s27, %s41
      %p43 = scmp.eq.s32.totalorder %s22, 0
      %p44 = por %p42, %p43
      %s45 = ssub.s32 %s16, %s23
      %p46 = scmp.eq.s32.totalorder %s45, 0
      %s48 = sadd.s32 %s47, 1
      %s49 = scalar_select %p46, %s47, %s48
      %p52 = pneg %p46
      %p53 = scmp.eq.s32.totalorder %s16, 1
      %p54 = por %p52, %p53
      %p55 = scmp.ne.s32.totalorder %s47, %s50
      %p56 = scmp.eq.s32.totalorder %s16, 0
      %p57 = por %p55, %p56
      %p58 = scmp.ne.s32.totalorder %s47, %s50
      %p59 = scmp.eq.s32.totalorder %s21, 1
      %p60 = por %p58, %p59
      %p61 = scmp.ne.s32.totalorder %s50, %s51
      %p62 = scmp.eq.s32.totalorder %s21, 0
      %p63 = por %p61, %p62
      %p64 = scmp.ne.s32.totalorder %s50, %s51
      %p65 = scmp.eq.s32.totalorder %s22, 1
      %p66 = por %p64, %p65
      %p68 = scmp.ne.s32.totalorder %s51, %s67
      %p69 = scmp.eq.s32.totalorder %s22, 0
      %p70 = por %p68, %p69
      %s71 = ssub.s32 %s16, %s23
      %p72 = scmp.eq.s32.totalorder %s71, 0
      %s74 = sadd.s32 %s73, 1
      %s75 = scalar_select %p72, %s73, %s74
      %p78 = pneg %p72
      %p79 = scmp.eq.s32.totalorder %s16, 1
      %p80 = por %p78, %p79
      %p81 = scmp.ne.s32.totalorder %s73, %s76
      %p82 = scmp.eq.s32.totalorder %s16, 0
      %p83 = por %p81, %p82
      %p84 = scmp.ne.s32.totalorder %s73, %s76
      %p85 = scmp.eq.s32.totalorder %s21, 1
      %p86 = por %p84, %p85
      %p87 = scmp.ne.s32.totalorder %s76, %s77
      %p88 = scmp.eq.s32.totalorder %s21, 0
      %p89 = por %p87, %p88
      %p90 = scmp.ne.s32.totalorder %s76, %s77
      %p91 = scmp.eq.s32.totalorder %s22, 1
      %p92 = por %p90, %p91
      %p94 = scmp.ne.s32.totalorder %s77, %s93
      %p95 = scmp.eq.s32.totalorder %s22, 0
      %p96 = por %p94, %p95
      %s97 = ssub.s32 %s16, %s23
      %p98 = scmp.eq.s32.totalorder %s97, 0
      %s100 = sadd.s32 %s99, 1
      %s101 = scalar_select %p98, %s99, %s100
      %p104 = pneg %p98
      %p105 = scmp.eq.s32.totalorder %s16, 1
      %p106 = por %p104, %p105
      %p107 = scmp.ne.s32.totalorder %s99, %s102
      %p108 = scmp.eq.s32.totalorder %s16, 0
      %p109 = por %p107, %p108
      %p110 = scmp.ne.s32.totalorder %s99, %s102
      %p111 = scmp.eq.s32.totalorder %s21, 1
      %p112 = por %p110, %p111
      %p113 = scmp.ne.s32.totalorder %s102, %s103
      %p114 = scmp.eq.s32.totalorder %s21, 0
      %p115 = por %p113, %p114
      %p116 = scmp.ne.s32.totalorder %s102, %s103
      %p117 = scmp.eq.s32.totalorder %s22, 1
      %p118 = por %p116, %p117
      %p120 = scmp.ne.s32.totalorder %s103, %s119
      %p121 = scmp.eq.s32.totalorder %s22, 0
      %p122 = por %p120, %p121
      %p123 = scmp.le.s32.totalorder 1, %s16
      %p124 = scmp.lt.s32.totalorder %s16, 3
      %p125 = pnand %p123, %p124
      %p126 = pneg %p125
      // Predicated region
      $region9: #{tpu_custom_call.1} parent=5 // pred_check
        _
      $region10: #{tpu_custom_call.1} parent=5 // pred_check_branch
        %128 = sbr.rel (%p125) target = $region12
      $region11: #{tpu_custom_call.1} parent=5 // pred_region
        %s129 = ssub.s32 %s16, 1
        // Predicated region
        $region13: #{tpu_custom_call.1} parent=11 // pred_check
          %p130 = pneg %p37
        $region14: #{tpu_custom_call.1} parent=11 // pred_check_branch
          %132 = sbr.rel (%p130) target = $region16
        $region15: #{tpu_custom_call.1} parent=11 // pred_region
          %134 = vsyncadd [#allocation3], 0
          %s136 = sshll.u32 %s0, 4
          %s137 = int_to_ptr.hbm [resolvable:$true] %s136
          %s138 = sshll.u32 [#allocation2], 4
          %s139 = int_to_ptr.vmem [resolvable:$true] %s138
          %141 = dma.hbm_to_vmem [thread:$0]  %s137, 2048, %s139, [#allocation3]
        $region16: #{tpu_custom_call.1} parent=11 // pred_fallthru
          _
      $region12: #{tpu_custom_call.1} parent=5 // pred_fallthru
        _
      %p142 = scmp.lt.s32.totalorder %s16, 2
      // Predicated region
      $region17: #{tpu_custom_call.1} parent=5 // pred_check
        %p143 = pneg %p142
      $region18: #{tpu_custom_call.1} parent=5 // pred_check_branch
        %145 = sbr.rel (%p143) target = $region20
      $region19: #{tpu_custom_call.1} parent=5 // pred_region
        // Predicated region
        $region21: #{tpu_custom_call.1} parent=19 // pred_check
          %p146 = pneg %p57
        $region22: #{tpu_custom_call.1} parent=19 // pred_check_branch
          %148 = sbr.rel (%p146) target = $region24
        $region23: #{tpu_custom_call.1} parent=19 // pred_region
          %s149 = sand.u32 %s16, 1
          %s150 = scalar_lea.sflag [#allocation6], %s149
          %s151 = sand.u32 %s47, 1
          %s152 = smul.addr %s151, 1024
          %s153 = scalar_lea.vmem [#allocation5], %s152
          %155 = vsyncadd %s150, 0
          %s156 = smul.addr %s16, 4
          %s157 = scalar_lea.hbm %s1, %s156
          %s158 = sshll.u32 %s157, 4
          %s159 = int_to_ptr.hbm [resolvable:$true] %s158
          %s160 = sshll.u32 %s153, 4
          %s161 = int_to_ptr.vmem [resolvable:$true] %s160
          %166 = dma.hbm_to_vmem [thread:$0]  %s159, 16384, %s161, %s150, 128, 64, 4
        $region24: #{tpu_custom_call.1} parent=19 // pred_fallthru
          _
        // Predicated region
        $region25: #{tpu_custom_call.1} parent=19 // pred_check
          %p167 = pneg %p83
        $region26: #{tpu_custom_call.1} parent=19 // pred_check_branch
          %169 = sbr.rel (%p167) target = $region28
        $region27: #{tpu_custom_call.1} parent=19 // pred_region
          %s170 = sand.u32 %s16, 1
          %s171 = scalar_lea.sflag [#allocation6], %s170
          %s172 = sand.u32 %s73, 1
          %s173 = scalar_lea.vmem [#allocation7], %s172
          %175 = vsyncadd %s171, 0
          %s176 = scalar_lea.hbm %s2, %s16
          %s178 = sshll.u32 %s176, 4
          %s179 = int_to_ptr.hbm [resolvable:$true] %s178
          %s180 = sshll.u32 %s173, 4
          %s181 = int_to_ptr.vmem [resolvable:$true] %s180
          %183 = dma.hbm_to_vmem [thread:$0]  %s179, 16, %s181, %s171
        $region28: #{tpu_custom_call.1} parent=19 // pred_fallthru
          _
      $region20: #{tpu_custom_call.1} parent=5 // pred_fallthru
        _
      %p184 = scmp.le.s32.totalorder 1, %s16
      %p185 = scmp.lt.s32.totalorder %s16, 3
      %p186 = pnand %p184, %p185
      %p187 = pneg %p186
      // Predicated region
      $region29: #{tpu_custom_call.1} parent=5 // pred_check
        _
      $region30: #{tpu_custom_call.1} parent=5 // pred_check_branch
        %189 = sbr.rel (%p186) target = $region32
      $region31: #{tpu_custom_call.1} parent=5 // pred_region
        %s190 = ssub.s32 %s16, 1
        // Predicated region
        $region33: #{tpu_custom_call.1} parent=31 // pred_check
          %p191 = pneg %p37
        $region34: #{tpu_custom_call.1} parent=31 // pred_check_branch
          %193 = sbr.rel (%p191) target = $region36
        $region35: #{tpu_custom_call.1} parent=31 // pred_region
          %195 = dma.done [#allocation3], 2048
        $region36: #{tpu_custom_call.1} parent=31 // pred_fallthru
          _
        %s196 = sand.u32 %s21, 1
        %s197 = scalar_lea.sflag [#allocation6], %s196
        %s198 = sand.u32 %s50, 1
        %s199 = smul.addr %s198, 1024
        %s200 = scalar_lea.vmem [#allocation5], %s199
        // Predicated region
        $region37: #{tpu_custom_call.1} parent=31 // pred_check
          %p201 = pneg %p63
        $region38: #{tpu_custom_call.1} parent=31 // pred_check_branch
          %203 = sbr.rel (%p201) target = $region40
        $region39: #{tpu_custom_call.1} parent=31 // pred_region
          %205 = dma.done %s197, 16384
        $region40: #{tpu_custom_call.1} parent=31 // pred_fallthru
          _
        %s206 = sand.u32 %s21, 1
        %s207 = scalar_lea.sflag [#allocation6], %s206
        %s208 = sand.u32 %s76, 1
        %s209 = scalar_lea.vmem [#allocation7], %s208
        // Predicated region
        $region41: #{tpu_custom_call.1} parent=31 // pred_check
          %p210 = pneg %p89
        $region42: #{tpu_custom_call.1} parent=31 // pred_check_branch
          %212 = sbr.rel (%p210) target = $region44
        $region43: #{tpu_custom_call.1} parent=31 // pred_region
          %214 = dma.done %s207, 16
        $region44: #{tpu_custom_call.1} parent=31 // pred_fallthru
          _
        %p215 = pneg %p37
        %p216 = pneg %p34
        %s217 = sand.u32 %s21, 1
        %s218 = scalar_lea.sflag [#allocation6], %s217
        %s219 = sand.u32 %s50, 1
        %s220 = smul.addr %s219, 1024
        %s221 = scalar_lea.vmem [#allocation5], %s220
        %p222 = pneg %p63
        %p223 = pneg %p60
        %s224 = sand.u32 %s21, 1
        %s225 = scalar_lea.sflag [#allocation6], %s224
        %s226 = sand.u32 %s76, 1
        %s227 = scalar_lea.vmem [#allocation7], %s226
        %p228 = pneg %p89
        %p229 = pneg %p86
        %p230 = pneg %p115
        %p231 = pneg %p112
        %s232 = sand.u32 %s102, 1
        %s233 = scalar_lea.sflag [#allocation4], %s232
        %s234 = sand.u32 %s102, 1
        %s235 = smul.addr %s234, 8
        %s236 = scalar_lea.vmem [#allocation8], %s235
        %v237 = vld [vmem:[#allocation2] sm:$0xff]
        %v238 = vld [vmem:[#allocation2 + $0x8] sm:$0xff]
        %v239 = vld [vmem:[#allocation2 + $0x10] sm:$0xff]
        %v240 = vld [vmem:[#allocation2 + $0x18] sm:$0xff]
        %v241 = vld [vmem:[#allocation2 + $0x20] sm:$0xff]
        %v242 = vld [vmem:[#allocation2 + $0x28] sm:$0xff]
        %v243 = vld [vmem:[#allocation2 + $0x30] sm:$0xff]
        %v244 = vld [vmem:[#allocation2 + $0x38] sm:$0xff]
        %v245 = vld [vmem:[#allocation2 + $0x40] sm:$0xff]
        %v246 = vld [vmem:[#allocation2 + $0x48] sm:$0xff]
        %v247 = vld [vmem:[#allocation2 + $0x50] sm:$0xff]
        %v248 = vld [vmem:[#allocation2 + $0x58] sm:$0xff]
        %v249 = vld [vmem:[#allocation2 + $0x60] sm:$0xff]
        %v250 = vld [vmem:[#allocation2 + $0x68] sm:$0xff]
        %v251 = vld [vmem:[#allocation2 + $0x70] sm:$0xff]
        %v252 = vld [vmem:[#allocation2 + $0x78] sm:$0xff]
        %v253 = vpack.c.bf16 %v237, %v237
        %v254 = vpack.c.bf16 %v238, %v238
        %v255 = vpack.c.bf16 %v239, %v239
        %v256 = vpack.c.bf16 %v240, %v240
        %v257 = vpack.c.bf16 %v241, %v241
        %v258 = vpack.c.bf16 %v242, %v242
        %v259 = vpack.c.bf16 %v243, %v243
        %v260 = vpack.c.bf16 %v244, %v244
        %v261 = vpack.c.bf16 %v245, %v245
        %v262 = vpack.c.bf16 %v246, %v246
        %v263 = vpack.c.bf16 %v247, %v247
        %v264 = vpack.c.bf16 %v248, %v248
        %v265 = vpack.c.bf16 %v249, %v249
        %v266 = vpack.c.bf16 %v250, %v250
        %v267 = vpack.c.bf16 %v251, %v251
        %v268 = vpack.c.bf16 %v252, %v252
        %v269 = vld [vmem:[%s200] sm:$0xf]
        %v270 = vld [vmem:[%s200 + $0x4] sm:$0xf]
        %v271 = vld [vmem:[%s200 + $0x8] sm:$0xf]
        %v272 = vld [vmem:[%s200 + $0xc] sm:$0xf]
        %v273 = vld [vmem:[%s200 + $0x10] sm:$0xf]
        %v274 = vld [vmem:[%s200 + $0x14] sm:$0xf]
        %v275 = vld [vmem:[%s200 + $0x18] sm:$0xf]
        %v276 = vld [vmem:[%s200 + $0x1c] sm:$0xf]
        %v277 = vld [vmem:[%s200 + $0x20] sm:$0xf]
        %v278 = vld [vmem:[%s200 + $0x24] sm:$0xf]
        %v279 = vld [vmem:[%s200 + $0x28] sm:$0xf]
        %v280 = vld [vmem:[%s200 + $0x2c] sm:$0xf]
        %v281 = vld [vmem:[%s200 + $0x30] sm:$0xf]
        %v282 = vld [vmem:[%s200 + $0x34] sm:$0xf]
        %v283 = vld [vmem:[%s200 + $0x38] sm:$0xf]
        %v284 = vld [vmem:[%s200 + $0x3c] sm:$0xf]
        %v285 = vld [vmem:[%s200 + $0x40] sm:$0xf]
        %v286 = vld [vmem:[%s200 + $0x44] sm:$0xf]
        %v287 = vld [vmem:[%s200 + $0x48] sm:$0xf]
        %v288 = vld [vmem:[%s200 + $0x4c] sm:$0xf]
        %v289 = vld [vmem:[%s200 + $0x50] sm:$0xf]
        %v290 = vld [vmem:[%s200 + $0x54] sm:$0xf]
        %v291 = vld [vmem:[%s200 + $0x58] sm:$0xf]
        %v292 = vld [vmem:[%s200 + $0x5c] sm:$0xf]
        %v293 = vld [vmem:[%s200 + $0x60] sm:$0xf]
        %v294 = vld [vmem:[%s200 + $0x64] sm:$0xf]
        %v295 = vld [vmem:[%s200 + $0x68] sm:$0xf]
        %v296 = vld [vmem:[%s200 + $0x6c] sm:$0xf]
        %v297 = vld [vmem:[%s200 + $0x70] sm:$0xf]
        %v298 = vld [vmem:[%s200 + $0x74] sm:$0xf]
        %v299 = vld [vmem:[%s200 + $0x78] sm:$0xf]
        %v300 = vld [vmem:[%s200 + $0x7c] sm:$0xf]
        %v301 = vld [vmem:[%s200 + $0x80] sm:$0xf]
        %v302 = vld [vmem:[%s200 + $0x84] sm:$0xf]
        %v303 = vld [vmem:[%s200 + $0x88] sm:$0xf]
        %v304 = vld [vmem:[%s200 + $0x8c] sm:$0xf]
        %v305 = vld [vmem:[%s200 + $0x90] sm:$0xf]
        %v306 = vld [vmem:[%s200 + $0x94] sm:$0xf]
        %v307 = vld [vmem:[%s200 + $0x98] sm:$0xf]
        %v308 = vld [vmem:[%s200 + $0x9c] sm:$0xf]
        %v309 = vld [vmem:[%s200 + $0xa0] sm:$0xf]
        %v310 = vld [vmem:[%s200 + $0xa4] sm:$0xf]
        %v311 = vld [vmem:[%s200 + $0xa8] sm:$0xf]
        %v312 = vld [vmem:[%s200 + $0xac] sm:$0xf]
        %v313 = vld [vmem:[%s200 + $0xb0] sm:$0xf]
        %v314 = vld [vmem:[%s200 + $0xb4] sm:$0xf]
        %v315 = vld [vmem:[%s200 + $0xb8] sm:$0xf]
        %v316 = vld [vmem:[%s200 + $0xbc] sm:$0xf]
        %v317 = vld [vmem:[%s200 + $0xc0] sm:$0xf]
        %v318 = vld [vmem:[%s200 + $0xc4] sm:$0xf]
        %v319 = vld [vmem:[%s200 + $0xc8] sm:$0xf]
        %v320 = vld [vmem:[%s200 + $0xcc] sm:$0xf]
        %v321 = vld [vmem:[%s200 + $0xd0] sm:$0xf]
        %v322 = vld [vmem:[%s200 + $0xd4] sm:$0xf]
        %v323 = vld [vmem:[%s200 + $0xd8] sm:$0xf]
        %v324 = vld [vmem:[%s200 + $0xdc] sm:$0xf]
        %v325 = vld [vmem:[%s200 + $0xe0] sm:$0xf]
        %v326 = vld [vmem:[%s200 + $0xe4] sm:$0xf]
        %v327 = vld [vmem:[%s200 + $0xe8] sm:$0xf]
        %v328 = vld [vmem:[%s200 + $0xec] sm:$0xf]
        %v329 = vld [vmem:[%s200 + $0xf0] sm:$0xf]
        %v330 = vld [vmem:[%s200 + $0xf4] sm:$0xf]
        %v331 = vld [vmem:[%s200 + $0xf8] sm:$0xf]
        %v332 = vld [vmem:[%s200 + $0xfc] sm:$0xf]
        %v333 = vld [vmem:[%s200 + $0x100] sm:$0xf]
        %v334 = vld [vmem:[%s200 + $0x104] sm:$0xf]
        %v335 = vld [vmem:[%s200 + $0x108] sm:$0xf]
        %v336 = vld [vmem:[%s200 + $0x10c] sm:$0xf]
        %v337 = vld [vmem:[%s200 + $0x110] sm:$0xf]
        %v338 = vld [vmem:[%s200 + $0x114] sm:$0xf]
        %v339 = vld [vmem:[%s200 + $0x118] sm:$0xf]
        %v340 = vld [vmem:[%s200 + $0x11c] sm:$0xf]
        %v341 = vld [vmem:[%s200 + $0x120] sm:$0xf]
        %v342 = vld [vmem:[%s200 + $0x124] sm:$0xf]
        %v343 = vld [vmem:[%s200 + $0x128] sm:$0xf]
        %v344 = vld [vmem:[%s200 + $0x12c] sm:$0xf]
        %v345 = vld [vmem:[%s200 + $0x130] sm:$0xf]
        %v346 = vld [vmem:[%s200 + $0x134] sm:$0xf]
        %v347 = vld [vmem:[%s200 + $0x138] sm:$0xf]
        %v348 = vld [vmem:[%s200 + $0x13c] sm:$0xf]
        %v349 = vld [vmem:[%s200 + $0x140] sm:$0xf]
        %v350 = vld [vmem:[%s200 + $0x144] sm:$0xf]
        %v351 = vld [vmem:[%s200 + $0x148] sm:$0xf]
        %v352 = vld [vmem:[%s200 + $0x14c] sm:$0xf]
        %v353 = vld [vmem:[%s200 + $0x150] sm:$0xf]
        %v354 = vld [vmem:[%s200 + $0x154] sm:$0xf]
        %v355 = vld [vmem:[%s200 + $0x158] sm:$0xf]
        %v356 = vld [vmem:[%s200 + $0x15c] sm:$0xf]
        %v357 = vld [vmem:[%s200 + $0x160] sm:$0xf]
        %v358 = vld [vmem:[%s200 + $0x164] sm:$0xf]
        %v359 = vld [vmem:[%s200 + $0x168] sm:$0xf]
        %v360 = vld [vmem:[%s200 + $0x16c] sm:$0xf]
        %v361 = vld [vmem:[%s200 + $0x170] sm:$0xf]
        %v362 = vld [vmem:[%s200 + $0x174] sm:$0xf]
        %v363 = vld [vmem:[%s200 + $0x178] sm:$0xf]
        %v364 = vld [vmem:[%s200 + $0x17c] sm:$0xf]
        %v365 = vld [vmem:[%s200 + $0x180] sm:$0xf]
        %v366 = vld [vmem:[%s200 + $0x184] sm:$0xf]
        %v367 = vld [vmem:[%s200 + $0x188] sm:$0xf]
        %v368 = vld [vmem:[%s200 + $0x18c] sm:$0xf]
        %v369 = vld [vmem:[%s200 + $0x190] sm:$0xf]
        %v370 = vld [vmem:[%s200 + $0x194] sm:$0xf]
        %v371 = vld [vmem:[%s200 + $0x198] sm:$0xf]
        %v372 = vld [vmem:[%s200 + $0x19c] sm:$0xf]
        %v373 = vld [vmem:[%s200 + $0x1a0] sm:$0xf]
        %v374 = vld [vmem:[%s200 + $0x1a4] sm:$0xf]
        %v375 = vld [vmem:[%s200 + $0x1a8] sm:$0xf]
        %v376 = vld [vmem:[%s200 + $0x1ac] sm:$0xf]
        %v377 = vld [vmem:[%s200 + $0x1b0] sm:$0xf]
        %v378 = vld [vmem:[%s200 + $0x1b4] sm:$0xf]
        %v379 = vld [vmem:[%s200 + $0x1b8] sm:$0xf]
        %v380 = vld [vmem:[%s200 + $0x1bc] sm:$0xf]
        %v381 = vld [vmem:[%s200 + $0x1c0] sm:$0xf]
        %v382 = vld [vmem:[%s200 + $0x1c4] sm:$0xf]
        %v383 = vld [vmem:[%s200 + $0x1c8] sm:$0xf]
        %v384 = vld [vmem:[%s200 + $0x1cc] sm:$0xf]
        %v385 = vld [vmem:[%s200 + $0x1d0] sm:$0xf]
        %v386 = vld [vmem:[%s200 + $0x1d4] sm:$0xf]
        %v387 = vld [vmem:[%s200 + $0x1d8] sm:$0xf]
        %v388 = vld [vmem:[%s200 + $0x1dc] sm:$0xf]
        %v389 = vld [vmem:[%s200 + $0x1e0] sm:$0xf]
        %v390 = vld [vmem:[%s200 + $0x1e4] sm:$0xf]
        %v391 = vld [vmem:[%s200 + $0x1e8] sm:$0xf]
        %v392 = vld [vmem:[%s200 + $0x1ec] sm:$0xf]
        %v393 = vld [vmem:[%s200 + $0x1f0] sm:$0xf]
        %v394 = vld [vmem:[%s200 + $0x1f4] sm:$0xf]
        %v395 = vld [vmem:[%s200 + $0x1f8] sm:$0xf]
        %v396 = vld [vmem:[%s200 + $0x1fc] sm:$0xf]
        %v397 = vld [vmem:[%s200 + $0x200] sm:$0xf]
        %v398 = vld [vmem:[%s200 + $0x204] sm:$0xf]
        %v399 = vld [vmem:[%s200 + $0x208] sm:$0xf]
        %v400 = vld [vmem:[%s200 + $0x20c] sm:$0xf]
        %v401 = vld [vmem:[%s200 + $0x210] sm:$0xf]
        %v402 = vld [vmem:[%s200 + $0x214] sm:$0xf]
        %v403 = vld [vmem:[%s200 + $0x218] sm:$0xf]
        %v404 = vld [vmem:[%s200 + $0x21c] sm:$0xf]
        %v405 = vld [vmem:[%s200 + $0x220] sm:$0xf]
        %v406 = vld [vmem:[%s200 + $0x224] sm:$0xf]
        %v407 = vld [vmem:[%s200 + $0x228] sm:$0xf]
        %v408 = vld [vmem:[%s200 + $0x22c] sm:$0xf]
        %v409 = vld [vmem:[%s200 + $0x230] sm:$0xf]
        %v410 = vld [vmem:[%s200 + $0x234] sm:$0xf]
        %v411 = vld [vmem:[%s200 + $0x238] sm:$0xf]
        %v412 = vld [vmem:[%s200 + $0x23c] sm:$0xf]
        %v413 = vld [vmem:[%s200 + $0x240] sm:$0xf]
        %v414 = vld [vmem:[%s200 + $0x244] sm:$0xf]
        %v415 = vld [vmem:[%s200 + $0x248] sm:$0xf]
        %v416 = vld [vmem:[%s200 + $0x24c] sm:$0xf]
        %v417 = vld [vmem:[%s200 + $0x250] sm:$0xf]
        %v418 = vld [vmem:[%s200 + $0x254] sm:$0xf]
        %v419 = vld [vmem:[%s200 + $0x258] sm:$0xf]
        %v420 = vld [vmem:[%s200 + $0x25c] sm:$0xf]
        %v421 = vld [vmem:[%s200 + $0x260] sm:$0xf]
        %v422 = vld [vmem:[%s200 + $0x264] sm:$0xf]
        %v423 = vld [vmem:[%s200 + $0x268] sm:$0xf]
        %v424 = vld [vmem:[%s200 + $0x26c] sm:$0xf]
        %v425 = vld [vmem:[%s200 + $0x270] sm:$0xf]
        %v426 = vld [vmem:[%s200 + $0x274] sm:$0xf]
        %v427 = vld [vmem:[%s200 + $0x278] sm:$0xf]
        %v428 = vld [vmem:[%s200 + $0x27c] sm:$0xf]
        %v429 = vld [vmem:[%s200 + $0x280] sm:$0xf]
        %v430 = vld [vmem:[%s200 + $0x284] sm:$0xf]
        %v431 = vld [vmem:[%s200 + $0x288] sm:$0xf]
        %v432 = vld [vmem:[%s200 + $0x28c] sm:$0xf]
        %v433 = vld [vmem:[%s200 + $0x290] sm:$0xf]
        %v434 = vld [vmem:[%s200 + $0x294] sm:$0xf]
        %v435 = vld [vmem:[%s200 + $0x298] sm:$0xf]
        %v436 = vld [vmem:[%s200 + $0x29c] sm:$0xf]
        %v437 = vld [vmem:[%s200 + $0x2a0] sm:$0xf]
        %v438 = vld [vmem:[%s200 + $0x2a4] sm:$0xf]
        %v439 = vld [vmem:[%s200 + $0x2a8] sm:$0xf]
        %v440 = vld [vmem:[%s200 + $0x2ac] sm:$0xf]
        %v441 = vld [vmem:[%s200 + $0x2b0] sm:$0xf]
        %v442 = vld [vmem:[%s200 + $0x2b4] sm:$0xf]
        %v443 = vld [vmem:[%s200 + $0x2b8] sm:$0xf]
        %v444 = vld [vmem:[%s200 + $0x2bc] sm:$0xf]
        %v445 = vld [vmem:[%s200 + $0x2c0] sm:$0xf]
        %v446 = vld [vmem:[%s200 + $0x2c4] sm:$0xf]
        %v447 = vld [vmem:[%s200 + $0x2c8] sm:$0xf]
        %v448 = vld [vmem:[%s200 + $0x2cc] sm:$0xf]
        %v449 = vld [vmem:[%s200 + $0x2d0] sm:$0xf]
        %v450 = vld [vmem:[%s200 + $0x2d4] sm:$0xf]
        %v451 = vld [vmem:[%s200 + $0x2d8] sm:$0xf]
        %v452 = vld [vmem:[%s200 + $0x2dc] sm:$0xf]
        %v453 = vld [vmem:[%s200 + $0x2e0] sm:$0xf]
        %v454 = vld [vmem:[%s200 + $0x2e4] sm:$0xf]
        %v455 = vld [vmem:[%s200 + $0x2e8] sm:$0xf]
        %v456 = vld [vmem:[%s200 + $0x2ec] sm:$0xf]
        %v457 = vld [vmem:[%s200 + $0x2f0] sm:$0xf]
        %v458 = vld [vmem:[%s200 + $0x2f4] sm:$0xf]
        %v459 = vld [vmem:[%s200 + $0x2f8] sm:$0xf]
        %v460 = vld [vmem:[%s200 + $0x2fc] sm:$0xf]
        %v461 = vld [vmem:[%s200 + $0x300] sm:$0xf]
        %v462 = vld [vmem:[%s200 + $0x304] sm:$0xf]
        %v463 = vld [vmem:[%s200 + $0x308] sm:$0xf]
        %v464 = vld [vmem:[%s200 + $0x30c] sm:$0xf]
        %v465 = vld [vmem:[%s200 + $0x310] sm:$0xf]
        %v466 = vld [vmem:[%s200 + $0x314] sm:$0xf]
        %v467 = vld [vmem:[%s200 + $0x318] sm:$0xf]
        %v468 = vld [vmem:[%s200 + $0x31c] sm:$0xf]
        %v469 = vld [vmem:[%s200 + $0x320] sm:$0xf]
        %v470 = vld [vmem:[%s200 + $0x324] sm:$0xf]
        %v471 = vld [vmem:[%s200 + $0x328] sm:$0xf]
        %v472 = vld [vmem:[%s200 + $0x32c] sm:$0xf]
        %v473 = vld [vmem:[%s200 + $0x330] sm:$0xf]
        %v474 = vld [vmem:[%s200 + $0x334] sm:$0xf]
        %v475 = vld [vmem:[%s200 + $0x338] sm:$0xf]
        %v476 = vld [vmem:[%s200 + $0x33c] sm:$0xf]
        %v477 = vld [vmem:[%s200 + $0x340] sm:$0xf]
        %v478 = vld [vmem:[%s200 + $0x344] sm:$0xf]
        %v479 = vld [vmem:[%s200 + $0x348] sm:$0xf]
        %v480 = vld [vmem:[%s200 + $0x34c] sm:$0xf]
        %v481 = vld [vmem:[%s200 + $0x350] sm:$0xf]
        %v482 = vld [vmem:[%s200 + $0x354] sm:$0xf]
        %v483 = vld [vmem:[%s200 + $0x358] sm:$0xf]
        %v484 = vld [vmem:[%s200 + $0x35c] sm:$0xf]
        %v485 = vld [vmem:[%s200 + $0x360] sm:$0xf]
        %v486 = vld [vmem:[%s200 + $0x364] sm:$0xf]
        %v487 = vld [vmem:[%s200 + $0x368] sm:$0xf]
        %v488 = vld [vmem:[%s200 + $0x36c] sm:$0xf]
        %v489 = vld [vmem:[%s200 + $0x370] sm:$0xf]
        %v490 = vld [vmem:[%s200 + $0x374] sm:$0xf]
        %v491 = vld [vmem:[%s200 + $0x378] sm:$0xf]
        %v492 = vld [vmem:[%s200 + $0x37c] sm:$0xf]
        %v493 = vld [vmem:[%s200 + $0x380] sm:$0xf]
        %v494 = vld [vmem:[%s200 + $0x384] sm:$0xf]
        %v495 = vld [vmem:[%s200 + $0x388] sm:$0xf]
        %v496 = vld [vmem:[%s200 + $0x38c] sm:$0xf]
        %v497 = vld [vmem:[%s200 + $0x390] sm:$0xf]
        %v498 = vld [vmem:[%s200 + $0x394] sm:$0xf]
        %v499 = vld [vmem:[%s200 + $0x398] sm:$0xf]
        %v500 = vld [vmem:[%s200 + $0x39c] sm:$0xf]
        %v501 = vld [vmem:[%s200 + $0x3a0] sm:$0xf]
        %v502 = vld [vmem:[%s200 + $0x3a4] sm:$0xf]
        %v503 = vld [vmem:[%s200 + $0x3a8] sm:$0xf]
        %v504 = vld [vmem:[%s200 + $0x3ac] sm:$0xf]
        %v505 = vld [vmem:[%s200 + $0x3b0] sm:$0xf]
        %v506 = vld [vmem:[%s200 + $0x3b4] sm:$0xf]
        %v507 = vld [vmem:[%s200 + $0x3b8] sm:$0xf]
        %v508 = vld [vmem:[%s200 + $0x3bc] sm:$0xf]
        %v509 = vld [vmem:[%s200 + $0x3c0] sm:$0xf]
        %v510 = vld [vmem:[%s200 + $0x3c4] sm:$0xf]
        %v511 = vld [vmem:[%s200 + $0x3c8] sm:$0xf]
        %v512 = vld [vmem:[%s200 + $0x3cc] sm:$0xf]
        %v513 = vld [vmem:[%s200 + $0x3d0] sm:$0xf]
        %v514 = vld [vmem:[%s200 + $0x3d4] sm:$0xf]
        %v515 = vld [vmem:[%s200 + $0x3d8] sm:$0xf]
        %v516 = vld [vmem:[%s200 + $0x3dc] sm:$0xf]
        %v517 = vld [vmem:[%s200 + $0x3e0] sm:$0xf]
        %v518 = vld [vmem:[%s200 + $0x3e4] sm:$0xf]
        %v519 = vld [vmem:[%s200 + $0x3e8] sm:$0xf]
        %v520 = vld [vmem:[%s200 + $0x3ec] sm:$0xf]
        %v521 = vld [vmem:[%s200 + $0x3f0] sm:$0xf]
        %v522 = vld [vmem:[%s200 + $0x3f4] sm:$0xf]
        %v523 = vld [vmem:[%s200 + $0x3f8] sm:$0xf]
        %v524 = vld [vmem:[%s200 + $0x3fc] sm:$0xf]
        %v525 = vld [vmem:[%s209] sm:$0x1]
        %v527 = vperm.slane %v525, 0
        %v785 = vunpack.c.l.b16 %v269
        %v786 = vunpack.c.l.b16 %v270
        %v787 = vunpack.c.l.b16 %v271
        %v788 = vunpack.c.l.b16 %v272
        %v789 = vunpack.c.l.b16 %v273
        %v790 = vunpack.c.l.b16 %v274
        %v791 = vunpack.c.l.b16 %v275
        %v792 = vunpack.c.l.b16 %v276
        %v793 = vunpack.c.l.b16 %v277
        %v794 = vunpack.c.l.b16 %v278
        %v795 = vunpack.c.l.b16 %v279
        %v796 = vunpack.c.l.b16 %v280
        %v797 = vunpack.c.l.b16 %v281
        %v798 = vunpack.c.l.b16 %v282
        %v799 = vunpack.c.l.b16 %v283
        %v800 = vunpack.c.l.b16 %v284
        %v801 = vunpack.c.l.b16 %v285
        %v802 = vunpack.c.l.b16 %v286
        %v803 = vunpack.c.l.b16 %v287
        %v804 = vunpack.c.l.b16 %v288
        %v805 = vunpack.c.l.b16 %v289
        %v806 = vunpack.c.l.b16 %v290
        %v807 = vunpack.c.l.b16 %v291
        %v808 = vunpack.c.l.b16 %v292
        %v809 = vunpack.c.l.b16 %v293
        %v810 = vunpack.c.l.b16 %v294
        %v811 = vunpack.c.l.b16 %v295
        %v812 = vunpack.c.l.b16 %v296
        %v813 = vunpack.c.l.b16 %v297
        %v814 = vunpack.c.l.b16 %v298
        %v815 = vunpack.c.l.b16 %v299
        %v816 = vunpack.c.l.b16 %v300
        %v817 = vunpack.c.l.b16 %v301
        %v818 = vunpack.c.l.b16 %v302
        %v819 = vunpack.c.l.b16 %v303
        %v820 = vunpack.c.l.b16 %v304
        %v821 = vunpack.c.l.b16 %v305
        %v822 = vunpack.c.l.b16 %v306
        %v823 = vunpack.c.l.b16 %v307
        %v824 = vunpack.c.l.b16 %v308
        %v825 = vunpack.c.l.b16 %v309
        %v826 = vunpack.c.l.b16 %v310
        %v827 = vunpack.c.l.b16 %v311
        %v828 = vunpack.c.l.b16 %v312
        %v829 = vunpack.c.l.b16 %v313
        %v830 = vunpack.c.l.b16 %v314
        %v831 = vunpack.c.l.b16 %v315
        %v832 = vunpack.c.l.b16 %v316
        %v833 = vunpack.c.l.b16 %v317
        %v834 = vunpack.c.l.b16 %v318
        %v835 = vunpack.c.l.b16 %v319
        %v836 = vunpack.c.l.b16 %v320
        %v837 = vunpack.c.l.b16 %v321
        %v838 = vunpack.c.l.b16 %v322
        %v839 = vunpack.c.l.b16 %v323
        %v840 = vunpack.c.l.b16 %v324
        %v841 = vunpack.c.l.b16 %v325
        %v842 = vunpack.c.l.b16 %v326
        %v843 = vunpack.c.l.b16 %v327
        %v844 = vunpack.c.l.b16 %v328
        %v845 = vunpack.c.l.b16 %v329
        %v846 = vunpack.c.l.b16 %v330
        %v847 = vunpack.c.l.b16 %v331
        %v848 = vunpack.c.l.b16 %v332
        %v849 = vunpack.c.l.b16 %v333
        %v850 = vunpack.c.l.b16 %v334
        %v851 = vunpack.c.l.b16 %v335
        %v852 = vunpack.c.l.b16 %v336
        %v853 = vunpack.c.l.b16 %v337
        %v854 = vunpack.c.l.b16 %v338
        %v855 = vunpack.c.l.b16 %v339
        %v856 = vunpack.c.l.b16 %v340
        %v857 = vunpack.c.l.b16 %v341
        %v858 = vunpack.c.l.b16 %v342
        %v859 = vunpack.c.l.b16 %v343
        %v860 = vunpack.c.l.b16 %v344
        %v861 = vunpack.c.l.b16 %v345
        %v862 = vunpack.c.l.b16 %v346
        %v863 = vunpack.c.l.b16 %v347
        %v864 = vunpack.c.l.b16 %v348
        %v865 = vunpack.c.l.b16 %v349
        %v866 = vunpack.c.l.b16 %v350
        %v867 = vunpack.c.l.b16 %v351
        %v868 = vunpack.c.l.b16 %v352
        %v869 = vunpack.c.l.b16 %v353
        %v870 = vunpack.c.l.b16 %v354
        %v871 = vunpack.c.l.b16 %v355
        %v872 = vunpack.c.l.b16 %v356
        %v873 = vunpack.c.l.b16 %v357
        %v874 = vunpack.c.l.b16 %v358
        %v875 = vunpack.c.l.b16 %v359
        %v876 = vunpack.c.l.b16 %v360
        %v877 = vunpack.c.l.b16 %v361
        %v878 = vunpack.c.l.b16 %v362
        %v879 = vunpack.c.l.b16 %v363
        %v880 = vunpack.c.l.b16 %v364
        %v881 = vunpack.c.l.b16 %v365
        %v882 = vunpack.c.l.b16 %v366
        %v883 = vunpack.c.l.b16 %v367
        %v884 = vunpack.c.l.b16 %v368
        %v885 = vunpack.c.l.b16 %v369
        %v886 = vunpack.c.l.b16 %v370
        %v887 = vunpack.c.l.b16 %v371
        %v888 = vunpack.c.l.b16 %v372
        %v889 = vunpack.c.l.b16 %v373
        %v890 = vunpack.c.l.b16 %v374
        %v891 = vunpack.c.l.b16 %v375
        %v892 = vunpack.c.l.b16 %v376
        %v893 = vunpack.c.l.b16 %v377
        %v894 = vunpack.c.l.b16 %v378
        %v895 = vunpack.c.l.b16 %v379
        %v896 = vunpack.c.l.b16 %v380
        %v897 = vunpack.c.l.b16 %v381
        %v898 = vunpack.c.l.b16 %v382
        %v899 = vunpack.c.l.b16 %v383
        %v900 = vunpack.c.l.b16 %v384
        %v901 = vunpack.c.l.b16 %v385
        %v902 = vunpack.c.l.b16 %v386
        %v903 = vunpack.c.l.b16 %v387
        %v904 = vunpack.c.l.b16 %v388
        %v905 = vunpack.c.l.b16 %v389
        %v906 = vunpack.c.l.b16 %v390
        %v907 = vunpack.c.l.b16 %v391
        %v908 = vunpack.c.l.b16 %v392
        %v909 = vunpack.c.l.b16 %v393
        %v910 = vunpack.c.l.b16 %v394
        %v911 = vunpack.c.l.b16 %v395
        %v912 = vunpack.c.l.b16 %v396
        %v913 = vunpack.c.l.b16 %v397
        %v914 = vunpack.c.l.b16 %v398
        %v915 = vunpack.c.l.b16 %v399
        %v916 = vunpack.c.l.b16 %v400
        %v917 = vunpack.c.l.b16 %v401
        %v918 = vunpack.c.l.b16 %v402
        %v919 = vunpack.c.l.b16 %v403
        %v920 = vunpack.c.l.b16 %v404
        %v921 = vunpack.c.l.b16 %v405
        %v922 = vunpack.c.l.b16 %v406
        %v923 = vunpack.c.l.b16 %v407
        %v924 = vunpack.c.l.b16 %v408
        %v925 = vunpack.c.l.b16 %v409
        %v926 = vunpack.c.l.b16 %v410
        %v927 = vunpack.c.l.b16 %v411
        %v928 = vunpack.c.l.b16 %v412
        %v929 = vunpack.c.l.b16 %v413
        %v930 = vunpack.c.l.b16 %v414
        %v931 = vunpack.c.l.b16 %v415
        %v932 = vunpack.c.l.b16 %v416
        %v933 = vunpack.c.l.b16 %v417
        %v934 = vunpack.c.l.b16 %v418
        %v935 = vunpack.c.l.b16 %v419
        %v936 = vunpack.c.l.b16 %v420
        %v937 = vunpack.c.l.b16 %v421
        %v938 = vunpack.c.l.b16 %v422
        %v939 = vunpack.c.l.b16 %v423
        %v940 = vunpack.c.l.b16 %v424
        %v941 = vunpack.c.l.b16 %v425
        %v942 = vunpack.c.l.b16 %v426
        %v943 = vunpack.c.l.b16 %v427
        %v944 = vunpack.c.l.b16 %v428
        %v945 = vunpack.c.l.b16 %v429
        %v946 = vunpack.c.l.b16 %v430
        %v947 = vunpack.c.l.b16 %v431
        %v948 = vunpack.c.l.b16 %v432
        %v949 = vunpack.c.l.b16 %v433
        %v950 = vunpack.c.l.b16 %v434
        %v951 = vunpack.c.l.b16 %v435
        %v952 = vunpack.c.l.b16 %v436
        %v953 = vunpack.c.l.b16 %v437
        %v954 = vunpack.c.l.b16 %v438
        %v955 = vunpack.c.l.b16 %v439
        %v956 = vunpack.c.l.b16 %v440
        %v957 = vunpack.c.l.b16 %v441
        %v958 = vunpack.c.l.b16 %v442
        %v959 = vunpack.c.l.b16 %v443
        %v960 = vunpack.c.l.b16 %v444
        %v961 = vunpack.c.l.b16 %v445
        %v962 = vunpack.c.l.b16 %v446
        %v963 = vunpack.c.l.b16 %v447
        %v964 = vunpack.c.l.b16 %v448
        %v965 = vunpack.c.l.b16 %v449
        %v966 = vunpack.c.l.b16 %v450
        %v967 = vunpack.c.l.b16 %v451
        %v968 = vunpack.c.l.b16 %v452
        %v969 = vunpack.c.l.b16 %v453
        %v970 = vunpack.c.l.b16 %v454
        %v971 = vunpack.c.l.b16 %v455
        %v972 = vunpack.c.l.b16 %v456
        %v973 = vunpack.c.l.b16 %v457
        %v974 = vunpack.c.l.b16 %v458
        %v975 = vunpack.c.l.b16 %v459
        %v976 = vunpack.c.l.b16 %v460
        %v977 = vunpack.c.l.b16 %v461
        %v978 = vunpack.c.l.b16 %v462
        %v979 = vunpack.c.l.b16 %v463
        %v980 = vunpack.c.l.b16 %v464
        %v981 = vunpack.c.l.b16 %v465
        %v982 = vunpack.c.l.b16 %v466
        %v983 = vunpack.c.l.b16 %v467
        %v984 = vunpack.c.l.b16 %v468
        %v985 = vunpack.c.l.b16 %v469
        %v986 = vunpack.c.l.b16 %v470
        %v987 = vunpack.c.l.b16 %v471
        %v988 = vunpack.c.l.b16 %v472
        %v989 = vunpack.c.l.b16 %v473
        %v990 = vunpack.c.l.b16 %v474
        %v991 = vunpack.c.l.b16 %v475
        %v992 = vunpack.c.l.b16 %v476
        %v993 = vunpack.c.l.b16 %v477
        %v994 = vunpack.c.l.b16 %v478
        %v995 = vunpack.c.l.b16 %v479
        %v996 = vunpack.c.l.b16 %v480
        %v997 = vunpack.c.l.b16 %v481
        %v998 = vunpack.c.l.b16 %v482
        %v999 = vunpack.c.l.b16 %v483
        %v1000 = vunpack.c.l.b16 %v484
        %v1001 = vunpack.c.l.b16 %v485
        %v1002 = vunpack.c.l.b16 %v486
        %v1003 = vunpack.c.l.b16 %v487
        %v1004 = vunpack.c.l.b16 %v488
        %v1005 = vunpack.c.l.b16 %v489
        %v1006 = vunpack.c.l.b16 %v490
        %v1007 = vunpack.c.l.b16 %v491
        %v1008 = vunpack.c.l.b16 %v492
        %v1009 = vunpack.c.l.b16 %v493
        %v1010 = vunpack.c.l.b16 %v494
        %v1011 = vunpack.c.l.b16 %v495
        %v1012 = vunpack.c.l.b16 %v496
        %v1013 = vunpack.c.l.b16 %v497
        %v1014 = vunpack.c.l.b16 %v498
        %v1015 = vunpack.c.l.b16 %v499
        %v1016 = vunpack.c.l.b16 %v500
        %v1017 = vunpack.c.l.b16 %v501
        %v1018 = vunpack.c.l.b16 %v502
        %v1019 = vunpack.c.l.b16 %v503
        %v1020 = vunpack.c.l.b16 %v504
        %v1021 = vunpack.c.l.b16 %v505
        %v1022 = vunpack.c.l.b16 %v506
        %v1023 = vunpack.c.l.b16 %v507
        %v1024 = vunpack.c.l.b16 %v508
        %v1025 = vunpack.c.l.b16 %v509
        %v1026 = vunpack.c.l.b16 %v510
        %v1027 = vunpack.c.l.b16 %v511
        %v1028 = vunpack.c.l.b16 %v512
        %v1029 = vunpack.c.l.b16 %v513
        %v1030 = vunpack.c.l.b16 %v514
        %v1031 = vunpack.c.l.b16 %v515
        %v1032 = vunpack.c.l.b16 %v516
        %v1033 = vunpack.c.l.b16 %v517
        %v1034 = vunpack.c.l.b16 %v518
        %v1035 = vunpack.c.l.b16 %v519
        %v1036 = vunpack.c.l.b16 %v520
        %v1037 = vunpack.c.l.b16 %v521
        %v1038 = vunpack.c.l.b16 %v522
        %v1039 = vunpack.c.l.b16 %v523
        %v1040 = vunpack.c.l.b16 %v524
        %v1041 = vpack.c.b16 %v786, %v785
        %v1042 = vpack.c.b16 %v788, %v787
        %v1043 = vpack.c.b16 %v790, %v789
        %v1044 = vpack.c.b16 %v792, %v791
        %v1045 = vpack.c.b16 %v794, %v793
        %v1046 = vpack.c.b16 %v796, %v795
        %v1047 = vpack.c.b16 %v798, %v797
        %v1048 = vpack.c.b16 %v800, %v799
        %v1049 = vpack.c.b16 %v802, %v801
        %v1050 = vpack.c.b16 %v804, %v803
        %v1051 = vpack.c.b16 %v806, %v805
        %v1052 = vpack.c.b16 %v808, %v807
        %v1053 = vpack.c.b16 %v810, %v809
        %v1054 = vpack.c.b16 %v812, %v811
        %v1055 = vpack.c.b16 %v814, %v813
        %v1056 = vpack.c.b16 %v816, %v815
        %v1057 = vpack.c.b16 %v818, %v817
        %v1058 = vpack.c.b16 %v820, %v819
        %v1059 = vpack.c.b16 %v822, %v821
        %v1060 = vpack.c.b16 %v824, %v823
        %v1061 = vpack.c.b16 %v826, %v825
        %v1062 = vpack.c.b16 %v828, %v827
        %v1063 = vpack.c.b16 %v830, %v829
        %v1064 = vpack.c.b16 %v832, %v831
        %v1065 = vpack.c.b16 %v834, %v833
        %v1066 = vpack.c.b16 %v836, %v835
        %v1067 = vpack.c.b16 %v838, %v837
        %v1068 = vpack.c.b16 %v840, %v839
        %v1069 = vpack.c.b16 %v842, %v841
        %v1070 = vpack.c.b16 %v844, %v843
        %v1071 = vpack.c.b16 %v846, %v845
        %v1072 = vpack.c.b16 %v848, %v847
        %v1073 = vpack.c.b16 %v850, %v849
        %v1074 = vpack.c.b16 %v852, %v851
        %v1075 = vpack.c.b16 %v854, %v853
        %v1076 = vpack.c.b16 %v856, %v855
        %v1077 = vpack.c.b16 %v858, %v857
        %v1078 = vpack.c.b16 %v860, %v859
        %v1079 = vpack.c.b16 %v862, %v861
        %v1080 = vpack.c.b16 %v864, %v863
        %v1081 = vpack.c.b16 %v866, %v865
        %v1082 = vpack.c.b16 %v868, %v867
        %v1083 = vpack.c.b16 %v870, %v869
        %v1084 = vpack.c.b16 %v872, %v871
        %v1085 = vpack.c.b16 %v874, %v873
        %v1086 = vpack.c.b16 %v876, %v875
        %v1087 = vpack.c.b16 %v878, %v877
        %v1088 = vpack.c.b16 %v880, %v879
        %v1089 = vpack.c.b16 %v882, %v881
        %v1090 = vpack.c.b16 %v884, %v883
        %v1091 = vpack.c.b16 %v886, %v885
        %v1092 = vpack.c.b16 %v888, %v887
        %v1093 = vpack.c.b16 %v890, %v889
        %v1094 = vpack.c.b16 %v892, %v891
        %v1095 = vpack.c.b16 %v894, %v893
        %v1096 = vpack.c.b16 %v896, %v895
        %v1097 = vpack.c.b16 %v898, %v897
        %v1098 = vpack.c.b16 %v900, %v899
        %v1099 = vpack.c.b16 %v902, %v901
        %v1100 = vpack.c.b16 %v904, %v903
        %v1101 = vpack.c.b16 %v906, %v905
        %v1102 = vpack.c.b16 %v908, %v907
        %v1103 = vpack.c.b16 %v910, %v909
        %v1104 = vpack.c.b16 %v912, %v911
        %v1105 = vpack.c.b16 %v914, %v913
        %v1106 = vpack.c.b16 %v916, %v915
        %v1107 = vpack.c.b16 %v918, %v917
        %v1108 = vpack.c.b16 %v920, %v919
        %v1109 = vpack.c.b16 %v922, %v921
        %v1110 = vpack.c.b16 %v924, %v923
        %v1111 = vpack.c.b16 %v926, %v925
        %v1112 = vpack.c.b16 %v928, %v927
        %v1113 = vpack.c.b16 %v930, %v929
        %v1114 = vpack.c.b16 %v932, %v931
        %v1115 = vpack.c.b16 %v934, %v933
        %v1116 = vpack.c.b16 %v936, %v935
        %v1117 = vpack.c.b16 %v938, %v937
        %v1118 = vpack.c.b16 %v940, %v939
        %v1119 = vpack.c.b16 %v942, %v941
        %v1120 = vpack.c.b16 %v944, %v943
        %v1121 = vpack.c.b16 %v946, %v945
        %v1122 = vpack.c.b16 %v948, %v947
        %v1123 = vpack.c.b16 %v950, %v949
        %v1124 = vpack.c.b16 %v952, %v951
        %v1125 = vpack.c.b16 %v954, %v953
        %v1126 = vpack.c.b16 %v956, %v955
        %v1127 = vpack.c.b16 %v958, %v957
        %v1128 = vpack.c.b16 %v960, %v959
        %v1129 = vpack.c.b16 %v962, %v961
        %v1130 = vpack.c.b16 %v964, %v963
        %v1131 = vpack.c.b16 %v966, %v965
        %v1132 = vpack.c.b16 %v968, %v967
        %v1133 = vpack.c.b16 %v970, %v969
        %v1134 = vpack.c.b16 %v972, %v971
        %v1135 = vpack.c.b16 %v974, %v973
        %v1136 = vpack.c.b16 %v976, %v975
        %v1137 = vpack.c.b16 %v978, %v977
        %v1138 = vpack.c.b16 %v980, %v979
        %v1139 = vpack.c.b16 %v982, %v981
        %v1140 = vpack.c.b16 %v984, %v983
        %v1141 = vpack.c.b16 %v986, %v985
        %v1142 = vpack.c.b16 %v988, %v987
        %v1143 = vpack.c.b16 %v990, %v989
        %v1144 = vpack.c.b16 %v992, %v991
        %v1145 = vpack.c.b16 %v994, %v993
        %v1146 = vpack.c.b16 %v996, %v995
        %v1147 = vpack.c.b16 %v998, %v997
        %v1148 = vpack.c.b16 %v1000, %v999
        %v1149 = vpack.c.b16 %v1002, %v1001
        %v1150 = vpack.c.b16 %v1004, %v1003
        %v1151 = vpack.c.b16 %v1006, %v1005
        %v1152 = vpack.c.b16 %v1008, %v1007
        %v1153 = vpack.c.b16 %v1010, %v1009
        %v1154 = vpack.c.b16 %v1012, %v1011
        %v1155 = vpack.c.b16 %v1014, %v1013
        %v1156 = vpack.c.b16 %v1016, %v1015
        %v1157 = vpack.c.b16 %v1018, %v1017
        %v1158 = vpack.c.b16 %v1020, %v1019
        %v1159 = vpack.c.b16 %v1022, %v1021
        %v1160 = vpack.c.b16 %v1024, %v1023
        %v1161 = vpack.c.b16 %v1026, %v1025
        %v1162 = vpack.c.b16 %v1028, %v1027
        %v1163 = vpack.c.b16 %v1030, %v1029
        %v1164 = vpack.c.b16 %v1032, %v1031
        %v1165 = vpack.c.b16 %v1034, %v1033
        %v1166 = vpack.c.b16 %v1036, %v1035
        %v1167 = vpack.c.b16 %v1038, %v1037
        %v1168 = vpack.c.b16 %v1040, %v1039
        %1297 = vmatpush.bf16.msra.mxu0 %v1048
        %1298 = vmatpush.bf16.msra.mxu0 %v1047
        %1299 = vmatpush.bf16.msra.mxu0 %v1046
        %1300 = vmatpush.bf16.msra.mxu0 %v1045
        %1301 = vmatpush.bf16.msra.mxu0 %v1044
        %1302 = vmatpush.bf16.msra.mxu0 %v1043
        %1303 = vmatpush.bf16.msra.mxu0 %v1042
        %1304 = vmatpush.bf16.msra.mxu0 %v1041
        %1305 = vmatmul.bf16.gmra.mxu0 %v253
        %v1306 = vpop.f32.mrf.mxu0
        %v1307 = vadd.f32 %v527, %v1306
        %v1308 = vpop.f32.mrf.mxu0
        %1309 = vdwg.mxu0
        %1310 = vmatpush.bf16.msra.mxu0 %v1056
        %1311 = vmatpush.bf16.msra.mxu0 %v1055
        %1312 = vmatpush.bf16.msra.mxu0 %v1054
        %1313 = vmatpush.bf16.msra.mxu0 %v1053
        %1314 = vmatpush.bf16.msra.mxu0 %v1052
        %1315 = vmatpush.bf16.msra.mxu0 %v1051
        %1316 = vmatpush.bf16.msra.mxu0 %v1050
        %1317 = vmatpush.bf16.msra.mxu0 %v1049
        %1318 = vmatmul.bf16.gmra.mxu0 %v254
        %v1319 = vpop.f32.mrf.mxu0
        %v1320 = vadd.f32 %v1307, %v1319
        %v1321 = vpop.f32.mrf.mxu0
        %1322 = vdwg.mxu0
        %1323 = vmatpush.bf16.msra.mxu0 %v1064
        %1324 = vmatpush.bf16.msra.mxu0 %v1063
        %1325 = vmatpush.bf16.msra.mxu0 %v1062
        %1326 = vmatpush.bf16.msra.mxu0 %v1061
        %1327 = vmatpush.bf16.msra.mxu0 %v1060
        %1328 = vmatpush.bf16.msra.mxu0 %v1059
        %1329 = vmatpush.bf16.msra.mxu0 %v1058
        %1330 = vmatpush.bf16.msra.mxu0 %v1057
        %1331 = vmatmul.bf16.gmra.mxu0 %v255
        %v1332 = vpop.f32.mrf.mxu0
        %v1333 = vadd.f32 %v1320, %v1332
        %v1334 = vpop.f32.mrf.mxu0
        %1335 = vdwg.mxu0
        %1336 = vmatpush.bf16.msra.mxu0 %v1072
        %1337 = vmatpush.bf16.msra.mxu0 %v1071
        %1338 = vmatpush.bf16.msra.mxu0 %v1070
        %1339 = vmatpush.bf16.msra.mxu0 %v1069
        %1340 = vmatpush.bf16.msra.mxu0 %v1068
        %1341 = vmatpush.bf16.msra.mxu0 %v1067
        %1342 = vmatpush.bf16.msra.mxu0 %v1066
        %1343 = vmatpush.bf16.msra.mxu0 %v1065
        %1344 = vmatmul.bf16.gmra.mxu0 %v256
        %v1345 = vpop.f32.mrf.mxu0
        %v1346 = vadd.f32 %v1333, %v1345
        %v1347 = vpop.f32.mrf.mxu0
        %1348 = vdwg.mxu0
        %1349 = vmatpush.bf16.msra.mxu0 %v1080
        %1350 = vmatpush.bf16.msra.mxu0 %v1079
        %1351 = vmatpush.bf16.msra.mxu0 %v1078
        %1352 = vmatpush.bf16.msra.mxu0 %v1077
        %1353 = vmatpush.bf16.msra.mxu0 %v1076
        %1354 = vmatpush.bf16.msra.mxu0 %v1075
        %1355 = vmatpush.bf16.msra.mxu0 %v1074
        %1356 = vmatpush.bf16.msra.mxu0 %v1073
        %1357 = vmatmul.bf16.gmra.mxu0 %v257
        %v1358 = vpop.f32.mrf.mxu0
        %v1359 = vadd.f32 %v1346, %v1358
        %v1360 = vpop.f32.mrf.mxu0
        %1361 = vdwg.mxu0
        %1362 = vmatpush.bf16.msra.mxu0 %v1088
        %1363 = vmatpush.bf16.msra.mxu0 %v1087
        %1364 = vmatpush.bf16.msra.mxu0 %v1086
        %1365 = vmatpush.bf16.msra.mxu0 %v1085
        %1366 = vmatpush.bf16.msra.mxu0 %v1084
        %1367 = vmatpush.bf16.msra.mxu0 %v1083
        %1368 = vmatpush.bf16.msra.mxu0 %v1082
        %1369 = vmatpush.bf16.msra.mxu0 %v1081
        %1370 = vmatmul.bf16.gmra.mxu0 %v258
        %v1371 = vpop.f32.mrf.mxu0
        %v1372 = vadd.f32 %v1359, %v1371
        %v1373 = vpop.f32.mrf.mxu0
        %1374 = vdwg.mxu0
        %1375 = vmatpush.bf16.msra.mxu0 %v1096
        %1376 = vmatpush.bf16.msra.mxu0 %v1095
        %1377 = vmatpush.bf16.msra.mxu0 %v1094
        %1378 = vmatpush.bf16.msra.mxu0 %v1093
        %1379 = vmatpush.bf16.msra.mxu0 %v1092
        %1380 = vmatpush.bf16.msra.mxu0 %v1091
        %1381 = vmatpush.bf16.msra.mxu0 %v1090
        %1382 = vmatpush.bf16.msra.mxu0 %v1089
        %1383 = vmatmul.bf16.gmra.mxu0 %v259
        %v1384 = vpop.f32.mrf.mxu0
        %v1385 = vadd.f32 %v1372, %v1384
        %v1386 = vpop.f32.mrf.mxu0
        %1387 = vdwg.mxu0
        %1388 = vmatpush.bf16.msra.mxu0 %v1104
        %1389 = vmatpush.bf16.msra.mxu0 %v1103
        %1390 = vmatpush.bf16.msra.mxu0 %v1102
        %1391 = vmatpush.bf16.msra.mxu0 %v1101
        %1392 = vmatpush.bf16.msra.mxu0 %v1100
        %1393 = vmatpush.bf16.msra.mxu0 %v1099
        %1394 = vmatpush.bf16.msra.mxu0 %v1098
        %1395 = vmatpush.bf16.msra.mxu0 %v1097
        %1396 = vmatmul.bf16.gmra.mxu0 %v260
        %v1397 = vpop.f32.mrf.mxu0
        %v1398 = vadd.f32 %v1385, %v1397
        %v1399 = vpop.f32.mrf.mxu0
        %1400 = vdwg.mxu0
        %1401 = vmatpush.bf16.msra.mxu0 %v1112
        %1402 = vmatpush.bf16.msra.mxu0 %v1111
        %1403 = vmatpush.bf16.msra.mxu0 %v1110
        %1404 = vmatpush.bf16.msra.mxu0 %v1109
        %1405 = vmatpush.bf16.msra.mxu0 %v1108
        %1406 = vmatpush.bf16.msra.mxu0 %v1107
        %1407 = vmatpush.bf16.msra.mxu0 %v1106
        %1408 = vmatpush.bf16.msra.mxu0 %v1105
        %1409 = vmatmul.bf16.gmra.mxu0 %v261
        %v1410 = vpop.f32.mrf.mxu0
        %v1411 = vadd.f32 %v1398, %v1410
        %v1412 = vpop.f32.mrf.mxu0
        %1413 = vdwg.mxu0
        %1414 = vmatpush.bf16.msra.mxu0 %v1120
        %1415 = vmatpush.bf16.msra.mxu0 %v1119
        %1416 = vmatpush.bf16.msra.mxu0 %v1118
        %1417 = vmatpush.bf16.msra.mxu0 %v1117
        %1418 = vmatpush.bf16.msra.mxu0 %v1116
        %1419 = vmatpush.bf16.msra.mxu0 %v1115
        %1420 = vmatpush.bf16.msra.mxu0 %v1114
        %1421 = vmatpush.bf16.msra.mxu0 %v1113
        %1422 = vmatmul.bf16.gmra.mxu0 %v262
        %v1423 = vpop.f32.mrf.mxu0
        %v1424 = vadd.f32 %v1411, %v1423
        %v1425 = vpop.f32.mrf.mxu0
        %1426 = vdwg.mxu0
        %1427 = vmatpush.bf16.msra.mxu0 %v1128
        %1428 = vmatpush.bf16.msra.mxu0 %v1127
        %1429 = vmatpush.bf16.msra.mxu0 %v1126
        %1430 = vmatpush.bf16.msra.mxu0 %v1125
        %1431 = vmatpush.bf16.msra.mxu0 %v1124
        %1432 = vmatpush.bf16.msra.mxu0 %v1123
        %1433 = vmatpush.bf16.msra.mxu0 %v1122
        %1434 = vmatpush.bf16.msra.mxu0 %v1121
        %1435 = vmatmul.bf16.gmra.mxu0 %v263
        %v1436 = vpop.f32.mrf.mxu0
        %v1437 = vadd.f32 %v1424, %v1436
        %v1438 = vpop.f32.mrf.mxu0
        %1439 = vdwg.mxu0
        %1440 = vmatpush.bf16.msra.mxu0 %v1136
        %1441 = vmatpush.bf16.msra.mxu0 %v1135
        %1442 = vmatpush.bf16.msra.mxu0 %v1134
        %1443 = vmatpush.bf16.msra.mxu0 %v1133
        %1444 = vmatpush.bf16.msra.mxu0 %v1132
        %1445 = vmatpush.bf16.msra.mxu0 %v1131
        %1446 = vmatpush.bf16.msra.mxu0 %v1130
        %1447 = vmatpush.bf16.msra.mxu0 %v1129
        %1448 = vmatmul.bf16.gmra.mxu0 %v264
        %v1449 = vpop.f32.mrf.mxu0
        %v1450 = vadd.f32 %v1437, %v1449
        %v1451 = vpop.f32.mrf.mxu0
        %1452 = vdwg.mxu0
        %1453 = vmatpush.bf16.msra.mxu0 %v1144
        %1454 = vmatpush.bf16.msra.mxu0 %v1143
        %1455 = vmatpush.bf16.msra.mxu0 %v1142
        %1456 = vmatpush.bf16.msra.mxu0 %v1141
        %1457 = vmatpush.bf16.msra.mxu0 %v1140
        %1458 = vmatpush.bf16.msra.mxu0 %v1139
        %1459 = vmatpush.bf16.msra.mxu0 %v1138
        %1460 = vmatpush.bf16.msra.mxu0 %v1137
        %1461 = vmatmul.bf16.gmra.mxu0 %v265
        %v1462 = vpop.f32.mrf.mxu0
        %v1463 = vadd.f32 %v1450, %v1462
        %v1464 = vpop.f32.mrf.mxu0
        %1465 = vdwg.mxu0
        %1466 = vmatpush.bf16.msra.mxu0 %v1152
        %1467 = vmatpush.bf16.msra.mxu0 %v1151
        %1468 = vmatpush.bf16.msra.mxu0 %v1150
        %1469 = vmatpush.bf16.msra.mxu0 %v1149
        %1470 = vmatpush.bf16.msra.mxu0 %v1148
        %1471 = vmatpush.bf16.msra.mxu0 %v1147
        %1472 = vmatpush.bf16.msra.mxu0 %v1146
        %1473 = vmatpush.bf16.msra.mxu0 %v1145
        %1474 = vmatmul.bf16.gmra.mxu0 %v266
        %v1475 = vpop.f32.mrf.mxu0
        %v1476 = vadd.f32 %v1463, %v1475
        %v1477 = vpop.f32.mrf.mxu0
        %1478 = vdwg.mxu0
        %1479 = vmatpush.bf16.msra.mxu0 %v1160
        %1480 = vmatpush.bf16.msra.mxu0 %v1159
        %1481 = vmatpush.bf16.msra.mxu0 %v1158
        %1482 = vmatpush.bf16.msra.mxu0 %v1157
        %1483 = vmatpush.bf16.msra.mxu0 %v1156
        %1484 = vmatpush.bf16.msra.mxu0 %v1155
        %1485 = vmatpush.bf16.msra.mxu0 %v1154
        %1486 = vmatpush.bf16.msra.mxu0 %v1153
        %1487 = vmatmul.bf16.gmra.mxu0 %v267
        %v1488 = vpop.f32.mrf.mxu0
        %v1489 = vadd.f32 %v1476, %v1488
        %v1490 = vpop.f32.mrf.mxu0
        %1491 = vdwg.mxu0
        %1492 = vmatpush.bf16.msra.mxu0 %v1168
        %1493 = vmatpush.bf16.msra.mxu0 %v1167
        %1494 = vmatpush.bf16.msra.mxu0 %v1166
        %1495 = vmatpush.bf16.msra.mxu0 %v1165
        %1496 = vmatpush.bf16.msra.mxu0 %v1164
        %1497 = vmatpush.bf16.msra.mxu0 %v1163
        %1498 = vmatpush.bf16.msra.mxu0 %v1162
        %1499 = vmatpush.bf16.msra.mxu0 %v1161
        %1500 = vmatmul.bf16.gmra.mxu0 %v268
        %v1501 = vpop.f32.mrf.mxu0
        %v1502 = vadd.f32 %v1489, %v1501
        %v1503 = vpop.f32.mrf.mxu0
        %1504 = vdwg.mxu0
        %1505 = vst [vmem:[%s236] sm:$0xff] %v1502
        %s1506 = sand.u32 %s102, 1
        %s1507 = scalar_lea.sflag [#allocation4], %s1506
        %s1508 = sand.u32 %s102, 1
        %s1509 = smul.addr %s1508, 8
        %s1510 = scalar_lea.vmem [#allocation8], %s1509
        // Predicated region
        $region45: #{tpu_custom_call.1} parent=31 // pred_check
          %p1511 = pneg %p112
        $region46: #{tpu_custom_call.1} parent=31 // pred_check_branch
          %1513 = sbr.rel (%p1511) target = $region48
        $region47: #{tpu_custom_call.1} parent=31 // pred_region
          %1515 = vsyncadd %s1507, 0
          %s1516 = smul.addr %s21, 8
          %s1517 = scalar_lea.hbm %s3, %s1516
          %s1519 = sshll.u32 %s1510, 4
          %s1520 = int_to_ptr.vmem [resolvable:$true] %s1519
          %s1521 = sshll.u32 %s1517, 4
          %s1522 = int_to_ptr.hbm [resolvable:$true] %s1521
          %1524 = dma.vmem_to_hbm [thread:$0]  %s1520, 128, %s1522, %s1507
        $region48: #{tpu_custom_call.1} parent=31 // pred_fallthru
          _
      $region32: #{tpu_custom_call.1} parent=5 // pred_fallthru
        _
      %p1525 = scmp.le.s32.totalorder 2, %s16
      // Predicated region
      $region49: #{tpu_custom_call.1} parent=5 // pred_check
        %p1526 = pneg %p1525
      $region50: #{tpu_custom_call.1} parent=5 // pred_check_branch
        %1528 = sbr.rel (%p1526) target = $region52
      $region51: #{tpu_custom_call.1} parent=5 // pred_region
        %s1529 = ssub.s32 %s16, 2
        // Predicated region
        $region53: #{tpu_custom_call.1} parent=51 // pred_check
          %p1530 = pneg %p118
        $region54: #{tpu_custom_call.1} parent=51 // pred_check_branch
          %1532 = sbr.rel (%p1530) target = $region56
        $region55: #{tpu_custom_call.1} parent=51 // pred_region
          %s1533 = sand.u32 %s103, 1
          %s1534 = scalar_lea.sflag [#allocation4], %s1533
          %s1535 = sand.u32 %s103, 1
          %s1536 = smul.addr %s1535, 8
          %s1537 = scalar_lea.vmem [#allocation8], %s1536
          %1539 = dma.done %s1534, 128
        $region56: #{tpu_custom_call.1} parent=51 // pred_fallthru
          _
      $region52: #{tpu_custom_call.1} parent=5 // pred_fallthru
        _
    $region6: #{tpu_custom_call.1} parent=1 // loop_footer
      %s20 = sadd.s32 1, %s16
    $region7: #{tpu_custom_call.1} parent=1 // loop_footer_branch
      %15 = sbr.rel target = $region3
    $region8: #{tpu_custom_call.1} parent=1 // loop_exit
      _
    %1540 = vsyncpa [#allocation3], 1
    %s1541 = scalar_lea.sflag [#allocation3], 1
    %1542 = vsyncpa %s1541, 1
    %1543 = vsyncpa [#allocation6], 1
    %s1544 = scalar_lea.sflag [#allocation6], 1
    %1545 = vsyncpa %s1544, 1
    %1546 = vsyncpa [#allocation4], 1
    %s1547 = scalar_lea.sflag [#allocation4], 1
    %1548 = vsyncpa %s1547, 1

</llo_original>
